<compile_context>
chip_gen: v7x
topology: tpu7x:2x2x1
jax: 0.10.0
libtpu: 0.0.40
codegen_flags: <defaults>
</compile_context>

<pallas_src>
import functools

import jax
import jax.numpy as jnp
from jax.experimental import pallas as pl
from jax.experimental.pallas import tpu as pltpu


def _round_up(x, m):
    return ((x + m - 1) // m) * m


def mrnn_kernel(x_ref, w1_ref, b1_ref, w2_ref, b2_ref, out_ref):
    # h = relu([wt, rt_1] @ [W_w ; W_r + W_hh] + (b_ih + b_hh))
    h = jnp.maximum(
        jnp.dot(x_ref[...], w1_ref[...], preferred_element_type=jnp.float32)
        + b1_ref[...], 0.0)
    # out = relu(h @ (W_ur^T + I) + b_ur)   (residual folded into the weight)
    out_ref[...] = jnp.maximum(
        jnp.dot(h.astype(w2_ref.dtype), w2_ref[...],
                preferred_element_type=jnp.float32)
        + b2_ref[...], 0.0)


def prepare_params(params, inp_dim, hidden_dim, compute_dtype=jnp.float32):
    """One-time weight prep: transpose, fuse, zero-pad to lane-dense, cast for MXU."""
    I, H = inp_dim, hidden_dim
    w_ih = params["rnn_weight_ih"]            # (H, I+H), PyTorch layout
    w_hh = params["rnn_weight_hh"]            # (H, H)
    w_ur = params["ur_weight"]                # (H, H)

    # Stacked first-layer weight so x = [wt, rt_1] needs a single dot:
    #   W1 = [W_w ; W_r + W_hh]   (shape (I+H, H))
    w1 = jnp.concatenate([w_ih[:, :I].T, (w_ih[:, I:] + w_hh).T], axis=0)
    b1 = (params["rnn_bias_ih"] + params["rnn_bias_hh"]).reshape(1, H)
    # Residual folded into the Ur weight: relu(hW + b + h) == relu(h(W + I) + b).
    w2 = w_ur.T + jnp.eye(H, dtype=w_ur.dtype)
    b2 = params["ur_bias"].reshape(1, H)

    # Lane-dense zero padding (exact: padded K-rows contribute 0; padded output
    # columns are relu(0 + 0) = 0 and get sliced off in the wrapper).
    Kp = _round_up(I + H, 128)
    Hp = _round_up(H, 128)
    # TODO(synk): for very large H (> ~4k), tile K/N of w1/w2 with a third grid
    # axis instead of full-extent weight blocks to stay under v7x's 64 MiB VMEM.
    w1p = jnp.zeros((Kp, Hp), jnp.float32).at[: I + H, :H].set(w1).astype(compute_dtype)
    w2p = jnp.zeros((Hp, Hp), jnp.float32).at[:H, :H].set(w2).astype(compute_dtype)
    b1p = jnp.zeros((1, Hp), jnp.float32).at[:, :H].set(b1)   # epilogue stays f32
    b2p = jnp.zeros((1, Hp), jnp.float32).at[:, :H].set(b2)
    return {"w1": w1p, "b1": b1p, "w2": w2p, "b2": b2p,
            "inp_dim": I, "hidden_dim": H, "compute_dtype": compute_dtype}


def _pick_block_b(B, Kp, Hp, act_bytes):
    """Largest multiple-of-8 batch tile that keeps activations + double-buffering
    comfortably inside scoped VMEM (weights stay resident via constant index_map)."""
    budget = 24 * 1024 * 1024                       # conservative vs 32 MiB default
    weight_bytes = 2 * ((Kp * Hp + Hp * Hp) * act_bytes + 2 * Hp * 4)
    per_row = 2 * (Kp * act_bytes + Hp * 4) + Hp * 4   # x(2 bufs) + out(2 bufs) + h
    avail = max(budget - weight_bytes, per_row * 8)
    bb = max(8, min(512, (avail // per_row) // 8 * 8))
    return min(bb, _round_up(B, 8))


def mrnn_forward(wt, rt_1, prep):
    """wt: (1, B, I) f32, rt_1: (1, B, H) f32  ->  (1, B, H) f32."""
    assert wt.shape[0] == 1 and rt_1.shape[0] == 1, "mRNN requires seq_len == 1"
    I, H = prep["inp_dim"], prep["hidden_dim"]
    assert wt.shape[2] == I and rt_1.shape[2] == H
    B = wt.shape[1]
    cdt = prep["compute_dtype"]
    Kp, Hp = prep["w1"].shape
    act_bytes = jnp.dtype(cdt).itemsize

    block_b = _pick_block_b(B, Kp, Hp, act_bytes)
    Bp = _round_up(B, block_b)

    # Concat + zero-pad the input once on the XLA side (fuses with the producer
    # when this whole forward is jitted); then cast MXU operands once.
    x = jnp.concatenate([wt[0], rt_1[0]], axis=1)            # (B, I+H)
    x = jnp.pad(x, ((0, Bp - B), (0, Kp - (I + H)))).astype(cdt)

    out = pl.pallas_call(
        mrnn_kernel,
        out_shape=jax.ShapeDtypeStruct((Bp, Hp), jnp.float32),
        grid=(Bp // block_b,),
        in_specs=[
            pl.BlockSpec((block_b, Kp), lambda i: (i, 0)),   # x: tiled over batch
            pl.BlockSpec((Kp, Hp), lambda i: (0, 0)),        # w1: VMEM-resident
            pl.BlockSpec((1, Hp), lambda i: (0, 0)),         # b1
            pl.BlockSpec((Hp, Hp), lambda i: (0, 0)),        # w2: VMEM-resident
            pl.BlockSpec((1, Hp), lambda i: (0, 0)),         # b2
        ],
        out_specs=pl.BlockSpec((block_b, Hp), lambda i: (i, 0)),
        compiler_params=pltpu.CompilerParams(
            dimension_semantics=("parallel",)),
    )(x, prep["w1"], prep["b1"], prep["w2"], prep["b2"])

    return out[:B, :H][None, :, :]   # slice off padding -> (1, B, H)


def mrnn_reference(wt, rt_1, params):
    """Pure-JAX reference mirroring the PyTorch forward (seq_len = 1)."""
    x = jnp.concatenate([wt, rt_1], axis=2)[0]                      # (B, I+H)
    h = jax.nn.relu(x @ params["rnn_weight_ih"].T + params["rnn_bias_ih"]
                    + rt_1[0] @ params["rnn_weight_hh"].T + params["rnn_bias_hh"])
    lin = h @ params["ur_weight"].T + params["ur_bias"]
    return jax.nn.relu(lin + h)[None, :, :]


def init_params(key, inp_dim, hidden_dim):
    ks = jax.random.split(key, 6)
    k = 1.0 / jnp.sqrt(hidden_dim)
    u = lambda kk, shape: jax.random.uniform(kk, shape, jnp.float32, -k, k)
    return {
        "rnn_weight_ih": u(ks[0], (hidden_dim, inp_dim + hidden_dim)),
        "rnn_weight_hh": u(ks[1], (hidden_dim, hidden_dim)),
        "rnn_bias_ih":   u(ks[2], (hidden_dim,)),
        "rnn_bias_hh":   u(ks[3], (hidden_dim,)),
        "ur_weight":     u(ks[4], (hidden_dim, hidden_dim)),
        "ur_bias":       u(ks[5], (hidden_dim,)),
    }


if __name__ == "__main__":
    inp_dim, hidden_dim = 16, 32
    B = 8   # batch; seq_len is 1 by construction of the module

    key = jax.random.PRNGKey(0)
    kp, kw, kr = jax.random.split(key, 3)
    params = init_params(kp, inp_dim, hidden_dim)
    wt = jax.random.normal(kw, (1, B, inp_dim), jnp.float32)
    rt_1 = jax.random.normal(kr, (1, B, hidden_dim), jnp.float32)

    ref = mrnn_reference(wt, rt_1, params)

    # f32 MXU path (tight correctness check vs. the PyTorch-equivalent reference).
    prep_f32 = prepare_params(params, inp_dim, hidden_dim, jnp.float32)
    fwd_f32 = jax.jit(functools.partial(mrnn_forward, prep=prep_f32))
    out = fwd_f32(wt, rt_1)
    jax.block_until_ready(out)
    assert out.shape == (1, B, hidden_dim)
    assert jnp.allclose(out, ref, atol=1e-5, rtol=1e-5)

    # bf16 MXU operands (v6e/v7x throughput + half weight DMA), f32 accumulation
    # and f32 epilogue — looser tolerance because of bf16 input rounding.
    prep_bf16 = prepare_params(params, inp_dim, hidden_dim, jnp.bfloat16)
    fwd_bf16 = jax.jit(functools.partial(mrnn_forward, prep=prep_bf16))
    out_bf16 = fwd_bf16(wt, rt_1)
    jax.block_until_ready(out_bf16)
    assert out_bf16.shape == (1, B, hidden_dim)
    assert jnp.allclose(out_bf16, ref, atol=5e-2, rtol=5e-2)

    print("KERNEL_OK")
</pallas_src>

<mosaic_0001>
module attributes {stable_mosaic.version = 11 : i64} {
  func.func @mrnn_kernel(%arg0: i32, %arg1: memref<8x128xf32, #tpu.memory_space<vmem>>, %arg2: memref<128x128xf32, #tpu.memory_space<vmem>>, %arg3: memref<1x128xf32, #tpu.memory_space<vmem>>, %arg4: memref<128x128xf32, #tpu.memory_space<vmem>>, %arg5: memref<1x128xf32, #tpu.memory_space<vmem>>, %arg6: memref<8x128xf32, #tpu.memory_space<vmem>>) attributes {dimension_semantics = [#tpu.dimension_semantics<parallel>], iteration_bounds = array<i64: 1>, scalar_prefetch = 0 : i64, scratch_operands = 0 : i64, tpu.core_type = #tpu.core_type<tc>, window_params = [{transform_indices = @transform_0, window_bounds = array<i64: 8, 128>}, {pipeline_mode = #tpu.pipeline_mode<synchronous>, transform_indices = @transform_1, window_bounds = array<i64: 128, 128>}, {pipeline_mode = #tpu.pipeline_mode<synchronous>, transform_indices = @transform_2, window_bounds = array<i64: 1, 128>}, {pipeline_mode = #tpu.pipeline_mode<synchronous>, transform_indices = @transform_3, window_bounds = array<i64: 128, 128>}, {pipeline_mode = #tpu.pipeline_mode<synchronous>, transform_indices = @transform_4, window_bounds = array<i64: 1, 128>}, {transform_indices = @transform_5, window_bounds = array<i64: 8, 128>}]} {
    %c0 = arith.constant 0 : index
    %c0_0 = arith.constant 0 : index
    %0 = vector.load %arg1[%c0, %c0_0] : memref<8x128xf32, #tpu.memory_space<vmem>>, vector<8x128xf32>
    %c0_1 = arith.constant 0 : index
    %c0_2 = arith.constant 0 : index
    %1 = vector.load %arg2[%c0_1, %c0_2] : memref<128x128xf32, #tpu.memory_space<vmem>>, vector<128x128xf32>
    %cst = arith.constant dense<0.000000e+00> : vector<8x128xf32>
    %2 = tpu.matmul %0, %1, %cst {dimension_numbers = #tpu.dot_dimension_numbers<[1], [0], [0], [1], [0, 0, 1, 1], [], []>} : vector<8x128xf32>, vector<128x128xf32>, vector<8x128xf32> -> vector<8x128xf32>
    %c0_3 = arith.constant 0 : index
    %c0_4 = arith.constant 0 : index
    %3 = vector.load %arg3[%c0_3, %c0_4] : memref<1x128xf32, #tpu.memory_space<vmem>>, vector<1x128xf32>
    %4 = vector.broadcast %3 : vector<1x128xf32> to vector<8x128xf32>
    %5 = arith.addf %2, %4 : vector<8x128xf32>
    %cst_5 = arith.constant 0.000000e+00 : f32
    %6 = vector.broadcast %cst_5 : f32 to vector<8x128xf32>
    %7 = arith.maximumf %5, %6 : vector<8x128xf32>
    %c0_6 = arith.constant 0 : index
    %c0_7 = arith.constant 0 : index
    %8 = vector.load %arg4[%c0_6, %c0_7] : memref<128x128xf32, #tpu.memory_space<vmem>>, vector<128x128xf32>
    %cst_8 = arith.constant dense<0.000000e+00> : vector<8x128xf32>
    %9 = tpu.matmul %7, %8, %cst_8 {dimension_numbers = #tpu.dot_dimension_numbers<[1], [0], [0], [1], [0, 0, 1, 1], [], []>} : vector<8x128xf32>, vector<128x128xf32>, vector<8x128xf32> -> vector<8x128xf32>
    %c0_9 = arith.constant 0 : index
    %c0_10 = arith.constant 0 : index
    %10 = vector.load %arg5[%c0_9, %c0_10] : memref<1x128xf32, #tpu.memory_space<vmem>>, vector<1x128xf32>
    %11 = vector.broadcast %10 : vector<1x128xf32> to vector<8x128xf32>
    %12 = arith.addf %9, %11 : vector<8x128xf32>
    %cst_11 = arith.constant 0.000000e+00 : f32
    %13 = vector.broadcast %cst_11 : f32 to vector<8x128xf32>
    %14 = arith.maximumf %12, %13 : vector<8x128xf32>
    %c0_12 = arith.constant 0 : index
    %c0_13 = arith.constant 0 : index
    %15 = vector.load %arg6[%c0_12, %c0_13] : memref<8x128xf32, #tpu.memory_space<vmem>>, vector<8x128xf32>
    tpu.vector_store %arg6[%c0_12, %c0_13], %14 {strides = array<i32>} : memref<8x128xf32, #tpu.memory_space<vmem>>, vector<8x128xf32>,
    return
  }
  func.func @transform_0(%arg0: i32) -> (i32, i32) {
    %c0_i32 = arith.constant 0 : i32
    %c0_i32_0 = arith.constant 0 : i32
    return %arg0, %c0_i32 : i32, i32
  }
  func.func @transform_1(%arg0: i32) -> (i32, i32) {
    %c0_i32 = arith.constant 0 : i32
    %c0_i32_0 = arith.constant 0 : i32
    %c0_i32_1 = arith.constant 0 : i32
    return %c0_i32, %c0_i32_0 : i32, i32
  }
  func.func @transform_2(%arg0: i32) -> (i32, i32) {
    %c0_i32 = arith.constant 0 : i32
    %c0_i32_0 = arith.constant 0 : i32
    %c0_i32_1 = arith.constant 0 : i32
    return %c0_i32, %c0_i32_0 : i32, i32
  }
  func.func @transform_3(%arg0: i32) -> (i32, i32) {
    %c0_i32 = arith.constant 0 : i32
    %c0_i32_0 = arith.constant 0 : i32
    %c0_i32_1 = arith.constant 0 : i32
    return %c0_i32, %c0_i32_0 : i32, i32
  }
  func.func @transform_4(%arg0: i32) -> (i32, i32) {
    %c0_i32 = arith.constant 0 : i32
    %c0_i32_0 = arith.constant 0 : i32
    %c0_i32_1 = arith.constant 0 : i32
    return %c0_i32, %c0_i32_0 : i32, i32
  }
  func.func @transform_5(%arg0: i32) -> (i32, i32) {
    %c0_i32 = arith.constant 0 : i32
    %c0_i32_0 = arith.constant 0 : i32
    return %arg0, %c0_i32 : i32, i32
  }
}

</mosaic_0001>

<llo_original>
// kernel: mrnn_forward.1
$region0: #{mrnn_forward.1}
  #allocation0 [shape = 'u32[]', space=smem, size = 0x4, offset = 0x4, fixed_abs, tag = 'smem constant byte address 0x4 - core index']
  #allocation1 [shape = 'u32[144,128]{1,0:T(1,128)}', space=vmem, size = 0x12000, scoped, tag = 'internal scratch']
  %s0 = inlined_call_operand.vmem [shape: f32[8,128], index: 0, kind: input, shape index: {}]
  %s1 = inlined_call_operand.hbm [shape: f32[128,128], index: 1, kind: input, shape index: {}]
  %s2 = inlined_call_operand.vmem [shape: f32[1,128], index: 2, kind: input, shape index: {}]
  %s3 = inlined_call_operand.hbm [shape: f32[128,128], index: 3, kind: input, shape index: {}]
  %s4 = inlined_call_operand.vmem [shape: f32[1,128], index: 4, kind: input, shape index: {}]
  %s5 = inlined_call_operand.vmem [shape: f32[8,128], index: 5, kind: output, shape index: {}]
  %s6 = sld [smem:[#allocation0]]
  $region38: #{mrnn_forward.1} parent=0
    _
  %s8 = ssub.s32 1, %s6
  %s9 = scalar_select 0, %s8, %s6
  $region1: #{mrnn_forward.1} parent=0
    #allocation2 [shape = 'u8[65536]{0}', space=vmem, size = 0x10000, scoped, tag = 'input window, operand 1, single buffered']
    #allocation3 [shape = 's32[1]{0}', space=sflag, size = 0x4, scoped, tag = 'scoped memory for mrnn_forward.1']
    #allocation4 [shape = 'u8[65536]{0}', space=vmem, size = 0x10000, scoped, tag = 'input window, operand 3, single buffered']
    #allocation5 [shape = 's32[1]{0}', space=sflag, size = 0x4, scoped, tag = 'scoped memory for mrnn_forward.1']
    %10 = vsyncpa [#allocation3], 0
    %11 = vsyncpa [#allocation5], 0
    // Predicated region
    $region2: #{mrnn_forward.1} parent=1 // pred_check
      _
    $region3: #{mrnn_forward.1} parent=1 // pred_check_branch
      %13 = sbr.rel (0) target = $region5
    $region4: #{mrnn_forward.1} parent=1 // pred_region
      _
    $region5: #{mrnn_forward.1} parent=1 // pred_fallthru
      _
    // Predicated region
    $region6: #{mrnn_forward.1} parent=1 // pred_check
      _
    $region7: #{mrnn_forward.1} parent=1 // pred_check_branch
      %15 = sbr.rel (0) target = $region9
    $region8: #{mrnn_forward.1} parent=1 // pred_region
      %s17 = ssub.s32 2048, 2048
      %18 = vsyncadd [#allocation3], %s17
      %s19 = sshll.u32 [#allocation2], 4
      %s20 = int_to_ptr.vmem [resolvable:$true] %s19
      %25 = dma.hbm_to_vmem [thread:$0]  %s1, 2048, %s20, [#allocation3], 128, 128, 8
    $region9: #{mrnn_forward.1} parent=1 // pred_fallthru
      _
    // Predicated region
    $region10: #{mrnn_forward.1} parent=1 // pred_check
      _
    $region11: #{mrnn_forward.1} parent=1 // pred_check_branch
      %27 = sbr.rel (0) target = $region13
    $region12: #{mrnn_forward.1} parent=1 // pred_region
      _
    $region13: #{mrnn_forward.1} parent=1 // pred_fallthru
      _
    // Predicated region
    $region14: #{mrnn_forward.1} parent=1 // pred_check
      _
    $region15: #{mrnn_forward.1} parent=1 // pred_check_branch
      %29 = sbr.rel (0) target = $region17
    $region16: #{mrnn_forward.1} parent=1 // pred_region
      %s31 = ssub.s32 2048, 2048
      %32 = vsyncadd [#allocation5], %s31
      %s33 = sshll.u32 [#allocation4], 4
      %s34 = int_to_ptr.vmem [resolvable:$true] %s33
      %39 = dma.hbm_to_vmem [thread:$0]  %s3, 2048, %s34, [#allocation5], 128, 128, 8
    $region17: #{mrnn_forward.1} parent=1 // pred_fallthru
      _
    // Predicated region
    $region18: #{mrnn_forward.1} parent=1 // pred_check
      _
    $region19: #{mrnn_forward.1} parent=1 // pred_check_branch
      %41 = sbr.rel (0) target = $region21
    $region20: #{mrnn_forward.1} parent=1 // pred_region
      _
    $region21: #{mrnn_forward.1} parent=1 // pred_fallthru
      _
    // Predicated region
    $region22: #{mrnn_forward.1} parent=1 // pred_check
      _
    $region23: #{mrnn_forward.1} parent=1 // pred_check_branch
      %43 = sbr.rel (0) target = $region25
    $region24: #{mrnn_forward.1} parent=1 // pred_region
      %44 = dma.done [#allocation3], 2048
    $region25: #{mrnn_forward.1} parent=1 // pred_fallthru
      _
    // Predicated region
    $region26: #{mrnn_forward.1} parent=1 // pred_check
      _
    $region27: #{mrnn_forward.1} parent=1 // pred_check_branch
      %46 = sbr.rel (0) target = $region29
    $region28: #{mrnn_forward.1} parent=1 // pred_region
      %47 = dma.done [#allocation5], 2048
    $region29: #{mrnn_forward.1} parent=1 // pred_fallthru
      _
    %v48 = vld [vmem:[%s0] sm:$0xff]
    %v49 = vld [vmem:[#allocation2] sm:$0xff]
    %v50 = vld [vmem:[#allocation2 + $0x8] sm:$0xff]
    %v51 = vld [vmem:[#allocation2 + $0x10] sm:$0xff]
    %v52 = vld [vmem:[#allocation2 + $0x18] sm:$0xff]
    %v53 = vld [vmem:[#allocation2 + $0x20] sm:$0xff]
    %v54 = vld [vmem:[#allocation2 + $0x28] sm:$0xff]
    %v55 = vld [vmem:[#allocation2 + $0x30] sm:$0xff]
    %v56 = vld [vmem:[#allocation2 + $0x38] sm:$0xff]
    %v57 = vld [vmem:[#allocation2 + $0x40] sm:$0xff]
    %v58 = vld [vmem:[#allocation2 + $0x48] sm:$0xff]
    %v59 = vld [vmem:[#allocation2 + $0x50] sm:$0xff]
    %v60 = vld [vmem:[#allocation2 + $0x58] sm:$0xff]
    %v61 = vld [vmem:[#allocation2 + $0x60] sm:$0xff]
    %v62 = vld [vmem:[#allocation2 + $0x68] sm:$0xff]
    %v63 = vld [vmem:[#allocation2 + $0x70] sm:$0xff]
    %v64 = vld [vmem:[#allocation2 + $0x78] sm:$0xff]
    %v65 = vld [vmem:[%s2] sm:$0x1]
    %v67 = vlaneseq
    %v68 = vshrl.u32 %v67, 7
    %v69 = vsub.s32 0, %v68
    %v70 = vrot.slane %v65, %v69
    %72 = vmatprep.subr.mxu0 0.0
    %73 = vmatpush1.msra.mxu0 %v49
    %74 = vmatprep.subr.mxu0 0.0
    %75 = vmatpush1.msra.mxu0 %v50
    %76 = vmatprep.subr.mxu0 0.0
    %77 = vmatpush1.msra.mxu0 %v51
    %78 = vmatprep.subr.mxu0 0.0
    %79 = vmatpush1.msra.mxu0 %v52
    %80 = vmatprep.subr.mxu0 0.0
    %81 = vmatpush1.msra.mxu0 %v53
    %82 = vmatprep.subr.mxu0 0.0
    %83 = vmatpush1.msra.mxu0 %v54
    %84 = vmatprep.subr.mxu0 0.0
    %85 = vmatpush1.msra.mxu0 %v55
    %86 = vmatprep.subr.mxu0 0.0
    %87 = vmatpush1.msra.mxu0 %v56
    %88 = vmatprep.subr.mxu0 0.0
    %89 = vmatpush1.msra.mxu0 %v57
    %90 = vmatprep.subr.mxu0 0.0
    %91 = vmatpush1.msra.mxu0 %v58
    %92 = vmatprep.subr.mxu0 0.0
    %93 = vmatpush1.msra.mxu0 %v59
    %94 = vmatprep.subr.mxu0 0.0
    %95 = vmatpush1.msra.mxu0 %v60
    %96 = vmatprep.subr.mxu0 0.0
    %97 = vmatpush1.msra.mxu0 %v61
    %98 = vmatprep.subr.mxu0 0.0
    %99 = vmatpush1.msra.mxu0 %v62
    %100 = vmatprep.subr.mxu0 0.0
    %101 = vmatpush1.msra.mxu0 %v63
    %102 = vmatprep.subr.mxu0 0.0
    %103 = vmatpush1.msra.mxu0 %v64
    %104 = vmatprep.subr.mxu0 0.0
    %105 = vmatpush1.msra.mxu0 0.0
    %106 = vmatprep.subr.mxu0 0.0
    %107 = vmatpush1.msra.mxu0 0.0
    %108 = vmatprep.subr.mxu0 0.0
    %109 = vmatpush1.msra.mxu0 0.0
    %110 = vmatprep.subr.mxu0 0.0
    %111 = vmatpush1.msra.mxu0 0.0
    %112 = vmatprep.subr.mxu0 0.0
    %113 = vmatpush1.msra.mxu0 0.0
    %114 = vmatprep.subr.mxu0 0.0
    %115 = vmatpush1.msra.mxu0 0.0
    %116 = vmatprep.subr.mxu0 0.0
    %117 = vmatpush1.msra.mxu0 0.0
    %118 = vmatprep.subr.mxu0 0.0
    %119 = vmatpush1.msra.mxu0 0.0
    %120 = vmatprep.subr.mxu0 0.0
    %121 = vmatpush1.msra.mxu0 0.0
    %122 = vmatprep.subr.mxu0 0.0
    %123 = vmatpush1.msra.mxu0 0.0
    %124 = vmatprep.subr.mxu0 0.0
    %125 = vmatpush1.msra.mxu0 0.0
    %126 = vmatprep.subr.mxu0 0.0
    %127 = vmatpush1.msra.mxu0 0.0
    %128 = vmatprep.subr.mxu0 0.0
    %129 = vmatpush1.msra.mxu0 0.0
    %130 = vmatprep.subr.mxu0 0.0
    %131 = vmatpush1.msra.mxu0 0.0
    %132 = vmatprep.subr.mxu0 0.0
    %133 = vmatpush1.msra.mxu0 0.0
    %134 = vmatprep.subr.mxu0 0.0
    %135 = vmatpush1.msra.mxu0 0.0
    %136 = vmatprep.mubr.f32.mxu0 0.0
    %137 = vmatmul.mubr.f32.gmra.mrb[0].mxu0 %v48
    %v138 = vpop.f32.mrb[0].mxu0
    %v139 = vadd.f32 %v70, %v138
    %v140 = vpop.f32.mrb[0].mxu0
    %141 = vdwg.mxu0
    %v142 = vmax.f32 %v139, 0.0
    %v143 = vld [vmem:[#allocation4] sm:$0xff]
    %v144 = vld [vmem:[#allocation4 + $0x8] sm:$0xff]
    %v145 = vld [vmem:[#allocation4 + $0x10] sm:$0xff]
    %v146 = vld [vmem:[#allocation4 + $0x18] sm:$0xff]
    %v147 = vld [vmem:[#allocation4 + $0x20] sm:$0xff]
    %v148 = vld [vmem:[#allocation4 + $0x28] sm:$0xff]
    %v149 = vld [vmem:[#allocation4 + $0x30] sm:$0xff]
    %v150 = vld [vmem:[#allocation4 + $0x38] sm:$0xff]
    %v151 = vld [vmem:[#allocation4 + $0x40] sm:$0xff]
    %v152 = vld [vmem:[#allocation4 + $0x48] sm:$0xff]
    %v153 = vld [vmem:[#allocation4 + $0x50] sm:$0xff]
    %v154 = vld [vmem:[#allocation4 + $0x58] sm:$0xff]
    %v155 = vld [vmem:[#allocation4 + $0x60] sm:$0xff]
    %v156 = vld [vmem:[#allocation4 + $0x68] sm:$0xff]
    %v157 = vld [vmem:[#allocation4 + $0x70] sm:$0xff]
    %v158 = vld [vmem:[#allocation4 + $0x78] sm:$0xff]
    %v159 = vld [vmem:[%s4] sm:$0x1]
    %v161 = vlaneseq
    %v162 = vshrl.u32 %v161, 7
    %v163 = vsub.s32 0, %v162
    %v164 = vrot.slane %v159, %v163
    %166 = vmatprep.subr.mxu0 0.0
    %167 = vmatpush1.msra.mxu0 %v143
    %168 = vmatprep.subr.mxu0 0.0
    %169 = vmatpush1.msra.mxu0 %v144
    %170 = vmatprep.subr.mxu0 0.0
    %171 = vmatpush1.msra.mxu0 %v145
    %172 = vmatprep.subr.mxu0 0.0
    %173 = vmatpush1.msra.mxu0 %v146
    %174 = vmatprep.subr.mxu0 0.0
    %175 = vmatpush1.msra.mxu0 %v147
    %176 = vmatprep.subr.mxu0 0.0
    %177 = vmatpush1.msra.mxu0 %v148
    %178 = vmatprep.subr.mxu0 0.0
    %179 = vmatpush1.msra.mxu0 %v149
    %180 = vmatprep.subr.mxu0 0.0
    %181 = vmatpush1.msra.mxu0 %v150
    %182 = vmatprep.subr.mxu0 0.0
    %183 = vmatpush1.msra.mxu0 %v151
    %184 = vmatprep.subr.mxu0 0.0
    %185 = vmatpush1.msra.mxu0 %v152
    %186 = vmatprep.subr.mxu0 0.0
    %187 = vmatpush1.msra.mxu0 %v153
    %188 = vmatprep.subr.mxu0 0.0
    %189 = vmatpush1.msra.mxu0 %v154
    %190 = vmatprep.subr.mxu0 0.0
    %191 = vmatpush1.msra.mxu0 %v155
    %192 = vmatprep.subr.mxu0 0.0
    %193 = vmatpush1.msra.mxu0 %v156
    %194 = vmatprep.subr.mxu0 0.0
    %195 = vmatpush1.msra.mxu0 %v157
    %196 = vmatprep.subr.mxu0 0.0
    %197 = vmatpush1.msra.mxu0 %v158
    %198 = vmatprep.subr.mxu0 0.0
    %199 = vmatpush1.msra.mxu0 0.0
    %200 = vmatprep.subr.mxu0 0.0
    %201 = vmatpush1.msra.mxu0 0.0
    %202 = vmatprep.subr.mxu0 0.0
    %203 = vmatpush1.msra.mxu0 0.0
    %204 = vmatprep.subr.mxu0 0.0
    %205 = vmatpush1.msra.mxu0 0.0
    %206 = vmatprep.subr.mxu0 0.0
    %207 = vmatpush1.msra.mxu0 0.0
    %208 = vmatprep.subr.mxu0 0.0
    %209 = vmatpush1.msra.mxu0 0.0
    %210 = vmatprep.subr.mxu0 0.0
    %211 = vmatpush1.msra.mxu0 0.0
    %212 = vmatprep.subr.mxu0 0.0
    %213 = vmatpush1.msra.mxu0 0.0
    %214 = vmatprep.subr.mxu0 0.0
    %215 = vmatpush1.msra.mxu0 0.0
    %216 = vmatprep.subr.mxu0 0.0
    %217 = vmatpush1.msra.mxu0 0.0
    %218 = vmatprep.subr.mxu0 0.0
    %219 = vmatpush1.msra.mxu0 0.0
    %220 = vmatprep.subr.mxu0 0.0
    %221 = vmatpush1.msra.mxu0 0.0
    %222 = vmatprep.subr.mxu0 0.0
    %223 = vmatpush1.msra.mxu0 0.0
    %224 = vmatprep.subr.mxu0 0.0
    %225 = vmatpush1.msra.mxu0 0.0
    %226 = vmatprep.subr.mxu0 0.0
    %227 = vmatpush1.msra.mxu0 0.0
    %228 = vmatprep.subr.mxu0 0.0
    %229 = vmatpush1.msra.mxu0 0.0
    %230 = vmatprep.mubr.f32.mxu0 0.0
    %231 = vmatmul.mubr.f32.gmra.mrb[0].mxu0 %v142
    %v232 = vpop.f32.mrb[0].mxu0
    %v233 = vadd.f32 %v164, %v232
    %v234 = vpop.f32.mrb[0].mxu0
    %235 = vdwg.mxu0
    %v236 = vmax.f32 %v233, 0.0
    %237 = vst [vmem:[%s5] sm:$0xff] %v236
    // Predicated region
    $region30: #{mrnn_forward.1} parent=1 // pred_check
      _
    $region31: #{mrnn_forward.1} parent=1 // pred_check_branch
      %239 = sbr.rel (0) target = $region33
    $region32: #{mrnn_forward.1} parent=1 // pred_region
      _
    $region33: #{mrnn_forward.1} parent=1 // pred_fallthru
      _
    // Predicated region
    $region34: #{mrnn_forward.1} parent=1 // pred_check
      _
    $region35: #{mrnn_forward.1} parent=1 // pred_check_branch
      %241 = sbr.rel (0) target = $region37
    $region36: #{mrnn_forward.1} parent=1 // pred_region
      _
    $region37: #{mrnn_forward.1} parent=1 // pred_fallthru
      _
    %242 = vsyncpa [#allocation3], 1
    %243 = vsyncpa [#allocation5], 1

</llo_original>
